<compile_context>
chip_gen: v5e
topology: v5e:2x2
jax: 0.10.0
libtpu: 0.0.40
codegen_flags: <defaults>
</compile_context>

<pallas_src>
import jax
import jax.numpy as jnp
from jax.experimental import pallas as pl
from jax.experimental.pallas import tpu as pltpu

HID1 = 128   # fc1 width
HID2 = 64    # value / advantage hidden width


def _round_up(n, m):
    return ((n + m - 1) // m) * m


def _cdiv(a, b):
    return -(-a // b)


# --------------------------------------------------------------------------- #
# Kernel
# --------------------------------------------------------------------------- #
def dueling_qnet_kernel(x_ref, w1_ref, b1_ref, wva_ref, bva_ref,
                        wq_ref, bq_ref, q_ref):
    # fc1 + relu -> h: [TILE_B, 128]  (f32 accumulator, bf16/f32 operands)
    h = jnp.dot(x_ref[...], w1_ref[...],
                preferred_element_type=jnp.float32) + b1_ref[...]
    h = jnp.maximum(h, 0.0)

    # Fused value|advantage hidden layer: one lane-full 128-wide matmul.
    # va[:, :64] = relu(value hidden), va[:, 64:] = relu(advantage hidden).
    va = jnp.dot(h.astype(wva_ref.dtype), wva_ref[...],
                 preferred_element_type=jnp.float32) + bva_ref[...]
    va = jnp.maximum(va, 0.0)

    # Value head + (adv - adv.mean) folded into a single [128, out] matmul
    # (fold done host-side).  Output written at true width (masked store).
    q = jnp.dot(va.astype(wq_ref.dtype), wq_ref[...],
                preferred_element_type=jnp.float32) + bq_ref[...]
    q_ref[...] = q.astype(q_ref.dtype)


# --------------------------------------------------------------------------- #
# Tiling / VMEM sizing
# --------------------------------------------------------------------------- #
def _choose_tiling(B, input_dim, output_dim, x_itemsize, q_itemsize):
    """Pick (tile_b, n_tiles, b_pad, vmem_limit_bytes) from the VMEM budget."""
    b8 = _round_up(max(B, 1), 8)

    # Physical VMEM per TensorCore: 128 MiB on v5e/v6e, 64 MiB on v7x.
    try:
        phys_vmem = int(pltpu.get_tpu_info().vmem_capacity_bytes)
    except Exception:
        phys_vmem = 64 << 20                      # conservative (v7x) fallback
    vmem_limit = min(phys_vmem // 2, 64 << 20)    # 64 MiB on v5e/v6e, 32 on v7x

    # Double-buffered x + q tiles; both are lane-padded to 128 inside VMEM.
    per_row = 2 * (_round_up(input_dim, 128) * x_itemsize
                   + _round_up(output_dim, 128) * q_itemsize)
    budget = (3 * vmem_limit) // 4                # headroom for weights/scratch
    tile_cap = max(8, min(16384, (budget // per_row) // 8 * 8))

    n_tiles = _cdiv(b8, tile_cap)
    if b8 >= 4096:
        # Keep >= 2 (even) grid steps so v7x's two TensorCores split the batch.
        n_tiles = max(n_tiles, 2)
        n_tiles += n_tiles % 2

    if n_tiles == 1:
        tile_b = b8                               # full-dim block: always legal
    else:
        tile_b = _round_up(_cdiv(b8, n_tiles), 16)  # bf16-sublane friendly
    b_pad = n_tiles * tile_b
    return tile_b, n_tiles, b_pad, vmem_limit


# --------------------------------------------------------------------------- #
# Forward wrapper
# --------------------------------------------------------------------------- #
def dueling_qnet_forward(x, params, *, compute_dtype=jnp.bfloat16,
                         out_dtype=jnp.float32):
    """x: [B, input_dim]. params: dict of pre-transposed ([in, out]) weights."""
    B, input_dim = x.shape
    output_dim = params["wao"].shape[1]
    cd = jnp.dtype(compute_dtype)
    od = jnp.dtype(out_dtype)

    # ---- host-side weight prep: layout plumbing + head/mean folding ----
    w1 = params["w1"].astype(cd)                                     # [in, 128]
    b1 = params["b1"].astype(jnp.float32)                            # [1, 128]
    w_va = jnp.concatenate([params["wv"], params["wa"]], axis=1).astype(cd)   # [128,128]
    b_va = jnp.concatenate([params["bv"], params["ba"]], axis=1).astype(jnp.float32)

    # Fold the value head and the advantage mean into one [128, out] matmul.
    wvo_rep = jnp.broadcast_to(params["wvo"], (HID2, output_dim))    # value weights per column
    wao_ctr = params["wao"] - params["wao"].mean(axis=1, keepdims=True)
    w_q = jnp.concatenate([wvo_rep, wao_ctr], axis=0).astype(cd)     # [128, out]
    b_q = (params["bvo"][0, 0] + params["bao"][0]
           - params["bao"][0].mean())[None, :].astype(jnp.float32)   # [1, out]

    x = x.astype(cd)

    # ---- batch tiling ----
    tile_b, n_tiles, b_pad, vmem_limit = _choose_tiling(
        B, input_dim, output_dim, cd.itemsize, od.itemsize)
    if b_pad != B:
        x = jnp.pad(x, ((0, b_pad - B), (0, 0)))   # zero rows -> harmless math

    weights = (w1, b1, w_va, b_va, w_q, b_q)

    def resident(arr):
        # Constant index map: weight stays resident in VMEM across grid steps.
        return pl.BlockSpec(arr.shape, lambda i: (0, 0))

    in_specs = [pl.BlockSpec((tile_b, input_dim), lambda i: (i, 0))]  # x (pipelined)
    in_specs += [resident(w) for w in weights]
    # True-width output block: last dim equals full array dim -> legal; masked
    # stores are far cheaper than writing 128 padded lanes to HBM.
    out_spec = pl.BlockSpec((tile_b, output_dim), lambda i: (i, 0))

    q = pl.pallas_call(
        dueling_qnet_kernel,
        out_shape=jax.ShapeDtypeStruct((b_pad, output_dim), od),
        grid=(n_tiles,),
        in_specs=in_specs,
        out_specs=out_spec,
        compiler_params=pltpu.CompilerParams(
            dimension_semantics=("parallel",),
            vmem_limit_bytes=int(vmem_limit)),
    )(x, *weights)

    return q if b_pad == B else q[:B]


# --------------------------------------------------------------------------- #
# Params / reference
# --------------------------------------------------------------------------- #
def init_params(key, input_dim, output_dim):
    """Deterministic synthetic init (PyTorch-style uniform fan-in bound)."""
    def linear(k, fan_in, fan_out):
        kw, kb = jax.random.split(k)
        bound = 1.0 / jnp.sqrt(fan_in)
        # Stored already transposed: [fan_in, fan_out]
        w = jax.random.uniform(kw, (fan_in, fan_out), jnp.float32, -bound, bound)
        b = jax.random.uniform(kb, (1, fan_out), jnp.float32, -bound, bound)
        return w, b

    k1, k2, k3, k4, k5 = jax.random.split(key, 5)
    w1, b1 = linear(k1, input_dim, HID1)
    wv, bv = linear(k2, HID1, HID2)
    wvo, bvo = linear(k3, HID2, 1)
    wa, ba = linear(k4, HID1, HID2)
    wao, bao = linear(k5, HID2, output_dim)
    return {"w1": w1, "b1": b1, "wv": wv, "bv": bv, "wvo": wvo, "bvo": bvo,
            "wa": wa, "ba": ba, "wao": wao, "bao": bao}


def reference_forward(x, p):
    """Pure-JAX reference mirroring the PyTorch forward exactly."""
    h = jax.nn.relu(x @ p["w1"] + p["b1"])
    v = jax.nn.relu(h @ p["wv"] + p["bv"])
    v = v @ p["wvo"] + p["bvo"]
    a = jax.nn.relu(h @ p["wa"] + p["ba"])
    a = a @ p["wao"] + p["bao"]
    return v + (a - a.mean(axis=1, keepdims=True))


if __name__ == "__main__":
    key = jax.random.PRNGKey(0)
    kx, kp = jax.random.split(key)

    B, input_dim, output_dim = 8, 16, 8
    x = jax.random.normal(kx, (B, input_dim), jnp.float32)
    params = init_params(kp, input_dim, output_dim)

    q_ref = reference_forward(x, params)

    # Exact-semantics path (f32 operands): tight tolerance vs the reference.
    q = dueling_qnet_forward(x, params, compute_dtype=jnp.float32)
    q = jax.block_until_ready(q)
    assert q.shape == (B, output_dim)
    assert jnp.allclose(q, q_ref, atol=1e-4, rtol=1e-4), "f32 mismatch vs reference"

    # Default production path (bf16 matmul operands, f32 accumulate/store).
    q_bf = jax.block_until_ready(dueling_qnet_forward(x, params))
    assert q_bf.shape == (B, output_dim)
    assert jnp.allclose(q_bf, q_ref, atol=2e-1, rtol=2e-1), "bf16 mismatch vs reference"

    print("KERNEL_OK")
</pallas_src>

<mosaic_0001>
module attributes {stable_mosaic.version = 11 : i64} {
  func.func @dueling_qnet_kernel(%arg0: i32, %arg1: memref<8x16xf32, #tpu.memory_space<vmem>>, %arg2: memref<16x128xf32, #tpu.memory_space<vmem>>, %arg3: memref<1x128xf32, #tpu.memory_space<vmem>>, %arg4: memref<128x128xf32, #tpu.memory_space<vmem>>, %arg5: memref<1x128xf32, #tpu.memory_space<vmem>>, %arg6: memref<128x8xf32, #tpu.memory_space<vmem>>, %arg7: memref<1x8xf32, #tpu.memory_space<vmem>>, %arg8: memref<8x8xf32, #tpu.memory_space<vmem>>) attributes {dimension_semantics = [#tpu.dimension_semantics<parallel>], iteration_bounds = array<i64: 1>, scalar_prefetch = 0 : i64, scratch_operands = 0 : i64, tpu.core_type = #tpu.core_type<tc>, window_params = [{transform_indices = @transform_0, window_bounds = array<i64: 8, 16>}, {pipeline_mode = #tpu.pipeline_mode<synchronous>, transform_indices = @transform_1, window_bounds = array<i64: 16, 128>}, {pipeline_mode = #tpu.pipeline_mode<synchronous>, transform_indices = @transform_2, window_bounds = array<i64: 1, 128>}, {pipeline_mode = #tpu.pipeline_mode<synchronous>, transform_indices = @transform_3, window_bounds = array<i64: 128, 128>}, {pipeline_mode = #tpu.pipeline_mode<synchronous>, transform_indices = @transform_4, window_bounds = array<i64: 1, 128>}, {pipeline_mode = #tpu.pipeline_mode<synchronous>, transform_indices = @transform_5, window_bounds = array<i64: 128, 8>}, {pipeline_mode = #tpu.pipeline_mode<synchronous>, transform_indices = @transform_6, window_bounds = array<i64: 1, 8>}, {transform_indices = @transform_7, window_bounds = array<i64: 8, 8>}]} {
    %c0 = arith.constant 0 : index
    %c0_0 = arith.constant 0 : index
    %0 = vector.load %arg1[%c0, %c0_0] : memref<8x16xf32, #tpu.memory_space<vmem>>, vector<8x16xf32>
    %c0_1 = arith.constant 0 : index
    %c0_2 = arith.constant 0 : index
    %1 = vector.load %arg2[%c0_1, %c0_2] : memref<16x128xf32, #tpu.memory_space<vmem>>, vector<16x128xf32>
    %cst = arith.constant dense<0.000000e+00> : vector<8x128xf32>
    %2 = tpu.matmul %0, %1, %cst {dimension_numbers = #tpu.dot_dimension_numbers<[1], [0], [0], [1], [0, 0, 1, 1], [], []>} : vector<8x16xf32>, vector<16x128xf32>, vector<8x128xf32> -> vector<8x128xf32>
    %c0_3 = arith.constant 0 : index
    %c0_4 = arith.constant 0 : index
    %3 = vector.load %arg3[%c0_3, %c0_4] : memref<1x128xf32, #tpu.memory_space<vmem>>, vector<1x128xf32>
    %4 = vector.broadcast %3 : vector<1x128xf32> to vector<8x128xf32>
    %5 = arith.addf %2, %4 : vector<8x128xf32>
    %cst_5 = arith.constant 0.000000e+00 : f32
    %6 = vector.broadcast %cst_5 : f32 to vector<8x128xf32>
    %7 = arith.maximumf %5, %6 : vector<8x128xf32>
    %c0_6 = arith.constant 0 : index
    %c0_7 = arith.constant 0 : index
    %8 = vector.load %arg4[%c0_6, %c0_7] : memref<128x128xf32, #tpu.memory_space<vmem>>, vector<128x128xf32>
    %cst_8 = arith.constant dense<0.000000e+00> : vector<8x128xf32>
    %9 = tpu.matmul %7, %8, %cst_8 {dimension_numbers = #tpu.dot_dimension_numbers<[1], [0], [0], [1], [0, 0, 1, 1], [], []>} : vector<8x128xf32>, vector<128x128xf32>, vector<8x128xf32> -> vector<8x128xf32>
    %c0_9 = arith.constant 0 : index
    %c0_10 = arith.constant 0 : index
    %10 = vector.load %arg5[%c0_9, %c0_10] : memref<1x128xf32, #tpu.memory_space<vmem>>, vector<1x128xf32>
    %11 = vector.broadcast %10 : vector<1x128xf32> to vector<8x128xf32>
    %12 = arith.addf %9, %11 : vector<8x128xf32>
    %cst_11 = arith.constant 0.000000e+00 : f32
    %13 = vector.broadcast %cst_11 : f32 to vector<8x128xf32>
    %14 = arith.maximumf %12, %13 : vector<8x128xf32>
    %c0_12 = arith.constant 0 : index
    %c0_13 = arith.constant 0 : index
    %15 = vector.load %arg6[%c0_12, %c0_13] : memref<128x8xf32, #tpu.memory_space<vmem>>, vector<128x8xf32>
    %cst_14 = arith.constant dense<0.000000e+00> : vector<8x8xf32>
    %16 = tpu.matmul %14, %15, %cst_14 {dimension_numbers = #tpu.dot_dimension_numbers<[1], [0], [0], [1], [0, 0, 1, 1], [], []>} : vector<8x128xf32>, vector<128x8xf32>, vector<8x8xf32> -> vector<8x8xf32>
    %c0_15 = arith.constant 0 : index
    %c0_16 = arith.constant 0 : index
    %17 = vector.load %arg7[%c0_15, %c0_16] : memref<1x8xf32, #tpu.memory_space<vmem>>, vector<1x8xf32>
    %18 = vector.broadcast %17 : vector<1x8xf32> to vector<8x8xf32>
    %19 = arith.addf %16, %18 : vector<8x8xf32>
    %c0_17 = arith.constant 0 : index
    %c0_18 = arith.constant 0 : index
    %20 = vector.load %arg8[%c0_17, %c0_18] : memref<8x8xf32, #tpu.memory_space<vmem>>, vector<8x8xf32>
    tpu.vector_store %arg8[%c0_17, %c0_18], %19 {strides = array<i32>} : memref<8x8xf32, #tpu.memory_space<vmem>>, vector<8x8xf32>,
    return
  }
  func.func @transform_0(%arg0: i32) -> (i32, i32) {
    %c0_i32 = arith.constant 0 : i32
    %c0_i32_0 = arith.constant 0 : i32
    return %arg0, %c0_i32 : i32, i32
  }
  func.func @transform_1(%arg0: i32) -> (i32, i32) {
    %c0_i32 = arith.constant 0 : i32
    %c0_i32_0 = arith.constant 0 : i32
    %c0_i32_1 = arith.constant 0 : i32
    return %c0_i32, %c0_i32_0 : i32, i32
  }
  func.func @transform_2(%arg0: i32) -> (i32, i32) {
    %c0_i32 = arith.constant 0 : i32
    %c0_i32_0 = arith.constant 0 : i32
    %c0_i32_1 = arith.constant 0 : i32
    return %c0_i32, %c0_i32_0 : i32, i32
  }
  func.func @transform_3(%arg0: i32) -> (i32, i32) {
    %c0_i32 = arith.constant 0 : i32
    %c0_i32_0 = arith.constant 0 : i32
    %c0_i32_1 = arith.constant 0 : i32
    return %c0_i32, %c0_i32_0 : i32, i32
  }
  func.func @transform_4(%arg0: i32) -> (i32, i32) {
    %c0_i32 = arith.constant 0 : i32
    %c0_i32_0 = arith.constant 0 : i32
    %c0_i32_1 = arith.constant 0 : i32
    return %c0_i32, %c0_i32_0 : i32, i32
  }
  func.func @transform_5(%arg0: i32) -> (i32, i32) {
    %c0_i32 = arith.constant 0 : i32
    %c0_i32_0 = arith.constant 0 : i32
    %c0_i32_1 = arith.constant 0 : i32
    return %c0_i32, %c0_i32_0 : i32, i32
  }
  func.func @transform_6(%arg0: i32) -> (i32, i32) {
    %c0_i32 = arith.constant 0 : i32
    %c0_i32_0 = arith.constant 0 : i32
    %c0_i32_1 = arith.constant 0 : i32
    return %c0_i32, %c0_i32_0 : i32, i32
  }
  func.func @transform_7(%arg0: i32) -> (i32, i32) {
    %c0_i32 = arith.constant 0 : i32
    %c0_i32_0 = arith.constant 0 : i32
    return %arg0, %c0_i32 : i32, i32
  }
}

</mosaic_0001>

<llo_original>
// kernel: tpu_custom_call.1
$region0: #{tpu_custom_call.1}
  #allocation0 [shape = 'u32[]', space=smem, size = 0x4, offset = 0x4, fixed_abs, tag = 'smem constant byte address 0x4 - core index']
  #allocation1 [shape = 'u32[72,128]{1,0:T(1,128)}', space=vmem, size = 0x9000, scoped, tag = 'internal scratch']
  %s0 = inlined_call_operand.vmem [shape: f32[8,16], index: 0, kind: input, shape index: {}]
  %s1 = inlined_call_operand.hbm [shape: f32[16,128], index: 1, kind: input, shape index: {}]
  %s2 = inlined_call_operand.vmem [shape: f32[1,128], index: 2, kind: input, shape index: {}]
  %s3 = inlined_call_operand.vmem [shape: f32[128,128], index: 3, kind: input, shape index: {}]
  %s4 = inlined_call_operand.vmem [shape: f32[1,128], index: 4, kind: input, shape index: {}]
  %s5 = inlined_call_operand.vmem [shape: f32[128,8], index: 5, kind: input, shape index: {}]
  %s6 = inlined_call_operand.vmem [shape: f32[1,8], index: 6, kind: input, shape index: {}]
  %s7 = inlined_call_operand.hbm [shape: f32[8,8], index: 7, kind: output, shape index: {}]
  %s8 = sld [smem:[#allocation0]]
  $region42: #{tpu_custom_call.1} parent=0
    _
  %s10 = ssub.s32 1, %s8
  %s11 = scalar_select 0, %s10, %s8
  $region1: #{tpu_custom_call.1} parent=0
    #allocation2 [shape = 'u8[8192]{0}', space=vmem, size = 0x2000, scoped, tag = 'input window, operand 1, single buffered']
    #allocation3 [shape = 's32[1]{0}', space=sflag, size = 0x4, scoped, tag = 'scoped memory for tpu_custom_call.1']
    #allocation4 [shape = 's32[1]{0}', space=sflag, size = 0x4, scoped, tag = 'scoped memory for tpu_custom_call.1']
    #allocation5 [shape = 'u8[4096]{0}', space=vmem, size = 0x1000, scoped, tag = 'output window, operand 0, single buffered']
    %12 = vsyncpa [#allocation3], 0
    %13 = vsyncpa [#allocation4], 0
    // Predicated region
    $region2: #{tpu_custom_call.1} parent=1 // pred_check
      _
    $region3: #{tpu_custom_call.1} parent=1 // pred_check_branch
      %15 = sbr.rel (0) target = $region5
    $region4: #{tpu_custom_call.1} parent=1 // pred_region
      _
    $region5: #{tpu_custom_call.1} parent=1 // pred_fallthru
      _
    // Predicated region
    $region6: #{tpu_custom_call.1} parent=1 // pred_check
      _
    $region7: #{tpu_custom_call.1} parent=1 // pred_check_branch
      %17 = sbr.rel (0) target = $region9
    $region8: #{tpu_custom_call.1} parent=1 // pred_region
      %19 = vsyncadd [#allocation3], 0
      %s20 = sshll.u32 %s1, 4
      %s21 = int_to_ptr.hbm [resolvable:$true] %s20
      %s22 = sshll.u32 [#allocation2], 4
      %s23 = int_to_ptr.vmem [resolvable:$true] %s22
      %28 = dma.hbm_to_vmem [thread:$0]  %s21, 256, %s23, [#allocation3], 128, 128, 8
    $region9: #{tpu_custom_call.1} parent=1 // pred_fallthru
      _
    // Predicated region
    $region10: #{tpu_custom_call.1} parent=1 // pred_check
      _
    $region11: #{tpu_custom_call.1} parent=1 // pred_check_branch
      %30 = sbr.rel (0) target = $region13
    $region12: #{tpu_custom_call.1} parent=1 // pred_region
      _
    $region13: #{tpu_custom_call.1} parent=1 // pred_fallthru
      _
    // Predicated region
    $region14: #{tpu_custom_call.1} parent=1 // pred_check
      _
    $region15: #{tpu_custom_call.1} parent=1 // pred_check_branch
      %32 = sbr.rel (0) target = $region17
    $region16: #{tpu_custom_call.1} parent=1 // pred_region
      _
    $region17: #{tpu_custom_call.1} parent=1 // pred_fallthru
      _
    // Predicated region
    $region18: #{tpu_custom_call.1} parent=1 // pred_check
      _
    $region19: #{tpu_custom_call.1} parent=1 // pred_check_branch
      %34 = sbr.rel (0) target = $region21
    $region20: #{tpu_custom_call.1} parent=1 // pred_region
      _
    $region21: #{tpu_custom_call.1} parent=1 // pred_fallthru
      _
    // Predicated region
    $region22: #{tpu_custom_call.1} parent=1 // pred_check
      _
    $region23: #{tpu_custom_call.1} parent=1 // pred_check_branch
      %36 = sbr.rel (0) target = $region25
    $region24: #{tpu_custom_call.1} parent=1 // pred_region
      _
    $region25: #{tpu_custom_call.1} parent=1 // pred_fallthru
      _
    // Predicated region
    $region26: #{tpu_custom_call.1} parent=1 // pred_check
      _
    $region27: #{tpu_custom_call.1} parent=1 // pred_check_branch
      %38 = sbr.rel (0) target = $region29
    $region28: #{tpu_custom_call.1} parent=1 // pred_region
      _
    $region29: #{tpu_custom_call.1} parent=1 // pred_fallthru
      _
    // Predicated region
    $region30: #{tpu_custom_call.1} parent=1 // pred_check
      _
    $region31: #{tpu_custom_call.1} parent=1 // pred_check_branch
      %40 = sbr.rel (0) target = $region33
    $region32: #{tpu_custom_call.1} parent=1 // pred_region
      %42 = dma.done [#allocation3], 256
    $region33: #{tpu_custom_call.1} parent=1 // pred_fallthru
      _
    %v43 = vld [vmem:[%s0] sm:$0xff]
    %v44 = vld [vmem:[#allocation2] sm:$0xff]
    %v45 = vld [vmem:[#allocation2 + $0x8] sm:$0xff]
    %v46 = vld [vmem:[%s2] sm:$0x1]
    %v48 = vperm.slane %v46, 0
    %vm50 = vcmask 130048
    %v52 = vsel %vm50, %v43, 0
    %54 = vmatpush.msra.mxu0 0.0
    %55 = vmatpush.msra.mxu0 0.0
    %56 = vmatpush.msra.mxu0 0.0
    %57 = vmatpush.msra.mxu0 0.0
    %58 = vmatpush.msra.mxu0 0.0
    %59 = vmatpush.msra.mxu0 0.0
    %60 = vmatpush.msra.mxu0 0.0
    %61 = vmatpush.msra.mxu0 0.0
    %62 = vmatpush.msra.mxu0 0.0
    %63 = vmatpush.msra.mxu0 0.0
    %64 = vmatpush.msra.mxu0 0.0
    %65 = vmatpush.msra.mxu0 0.0
    %66 = vmatpush.msra.mxu0 0.0
    %67 = vmatpush.msra.mxu0 0.0
    %68 = vmatpush.msra.mxu0 %v45
    %69 = vmatpush.msra.mxu0 %v44
    %70 = vmatmul.f32.gmra.mxu0 %v52
    %v71 = vpop.f32.mrf.mxu0
    %v72 = vadd.f32 %v48, %v71
    %73 = vdwg.mxu0
    %v74 = vmax.f32 %v72, 0.0
    %v75 = vld [vmem:[%s3] sm:$0xff]
    %v76 = vld [vmem:[%s3 + $0x8] sm:$0xff]
    %v77 = vld [vmem:[%s3 + $0x10] sm:$0xff]
    %v78 = vld [vmem:[%s3 + $0x18] sm:$0xff]
    %v79 = vld [vmem:[%s3 + $0x20] sm:$0xff]
    %v80 = vld [vmem:[%s3 + $0x28] sm:$0xff]
    %v81 = vld [vmem:[%s3 + $0x30] sm:$0xff]
    %v82 = vld [vmem:[%s3 + $0x38] sm:$0xff]
    %v83 = vld [vmem:[%s3 + $0x40] sm:$0xff]
    %v84 = vld [vmem:[%s3 + $0x48] sm:$0xff]
    %v85 = vld [vmem:[%s3 + $0x50] sm:$0xff]
    %v86 = vld [vmem:[%s3 + $0x58] sm:$0xff]
    %v87 = vld [vmem:[%s3 + $0x60] sm:$0xff]
    %v88 = vld [vmem:[%s3 + $0x68] sm:$0xff]
    %v89 = vld [vmem:[%s3 + $0x70] sm:$0xff]
    %v90 = vld [vmem:[%s3 + $0x78] sm:$0xff]
    %v91 = vld [vmem:[%s4] sm:$0x1]
    %v93 = vperm.slane %v91, 0
    %95 = vmatpush.msra.mxu0 %v90
    %96 = vmatpush.msra.mxu0 %v89
    %97 = vmatpush.msra.mxu0 %v88
    %98 = vmatpush.msra.mxu0 %v87
    %99 = vmatpush.msra.mxu0 %v86
    %100 = vmatpush.msra.mxu0 %v85
    %101 = vmatpush.msra.mxu0 %v84
    %102 = vmatpush.msra.mxu0 %v83
    %103 = vmatpush.msra.mxu0 %v82
    %104 = vmatpush.msra.mxu0 %v81
    %105 = vmatpush.msra.mxu0 %v80
    %106 = vmatpush.msra.mxu0 %v79
    %107 = vmatpush.msra.mxu0 %v78
    %108 = vmatpush.msra.mxu0 %v77
    %109 = vmatpush.msra.mxu0 %v76
    %110 = vmatpush.msra.mxu0 %v75
    %111 = vmatmul.f32.gmra.mxu0 %v74
    %v112 = vpop.f32.mrf.mxu0
    %v113 = vadd.f32 %v93, %v112
    %114 = vdwg.mxu0
    %v115 = vmax.f32 %v113, 0.0
    %v116 = vld [vmem:[%s5] sm:$0xff]
    %v117 = vld [vmem:[%s5 + $0x8] sm:$0xff]
    %v118 = vld [vmem:[%s5 + $0x10] sm:$0xff]
    %v119 = vld [vmem:[%s5 + $0x18] sm:$0xff]
    %v120 = vld [vmem:[%s5 + $0x20] sm:$0xff]
    %v121 = vld [vmem:[%s5 + $0x28] sm:$0xff]
    %v122 = vld [vmem:[%s5 + $0x30] sm:$0xff]
    %v123 = vld [vmem:[%s5 + $0x38] sm:$0xff]
    %v124 = vld [vmem:[%s5 + $0x40] sm:$0xff]
    %v125 = vld [vmem:[%s5 + $0x48] sm:$0xff]
    %v126 = vld [vmem:[%s5 + $0x50] sm:$0xff]
    %v127 = vld [vmem:[%s5 + $0x58] sm:$0xff]
    %v128 = vld [vmem:[%s5 + $0x60] sm:$0xff]
    %v129 = vld [vmem:[%s5 + $0x68] sm:$0xff]
    %v130 = vld [vmem:[%s5 + $0x70] sm:$0xff]
    %v131 = vld [vmem:[%s5 + $0x78] sm:$0xff]
    %v132 = vld [vmem:[%s6] sm:$0x1]
    %v134 = vperm.slane %v132, 0
    %136 = vmatpush.msra.mxu0 %v131
    %137 = vmatpush.msra.mxu0 %v130
    %138 = vmatpush.msra.mxu0 %v129
    %139 = vmatpush.msra.mxu0 %v128
    %140 = vmatpush.msra.mxu0 %v127
    %141 = vmatpush.msra.mxu0 %v126
    %142 = vmatpush.msra.mxu0 %v125
    %143 = vmatpush.msra.mxu0 %v124
    %144 = vmatpush.msra.mxu0 %v123
    %145 = vmatpush.msra.mxu0 %v122
    %146 = vmatpush.msra.mxu0 %v121
    %147 = vmatpush.msra.mxu0 %v120
    %148 = vmatpush.msra.mxu0 %v119
    %149 = vmatpush.msra.mxu0 %v118
    %150 = vmatpush.msra.mxu0 %v117
    %151 = vmatpush.msra.mxu0 %v116
    %152 = vmatmul.f32.gmra.mxu0 %v115
    %v153 = vpop.f32.mrf.mxu0
    %v154 = vadd.f32 %v134, %v153
    %155 = vdwg.mxu0
    %vm156 = vcmask 64512
    %157 = vst.msk [vmem:[#allocation5] sm:$0xff] %vm156, %v154
    // Predicated region
    $region34: #{tpu_custom_call.1} parent=1 // pred_check
      _
    $region35: #{tpu_custom_call.1} parent=1 // pred_check_branch
      %159 = sbr.rel (0) target = $region37
    $region36: #{tpu_custom_call.1} parent=1 // pred_region
      %161 = vsyncadd [#allocation4], 0
      %s163 = sshll.u32 [#allocation5], 4
      %s164 = int_to_ptr.vmem [resolvable:$true] %s163
      %s165 = sshll.u32 %s7, 4
      %s166 = int_to_ptr.hbm [resolvable:$true] %s165
      %168 = dma.vmem_to_hbm [thread:$0]  %s164, 128, %s166, [#allocation4]
    $region37: #{tpu_custom_call.1} parent=1 // pred_fallthru
      _
    // Predicated region
    $region38: #{tpu_custom_call.1} parent=1 // pred_check
      _
    $region39: #{tpu_custom_call.1} parent=1 // pred_check_branch
      %170 = sbr.rel (0) target = $region41
    $region40: #{tpu_custom_call.1} parent=1 // pred_region
      %172 = dma.done [#allocation4], 128
    $region41: #{tpu_custom_call.1} parent=1 // pred_fallthru
      _
    %173 = vsyncpa [#allocation3], 1
    %174 = vsyncpa [#allocation4], 1

</llo_original>
